<compile_context>
chip_gen: v7x
topology: tpu7x:2x2x1
jax: 0.10.0
libtpu: 0.0.40
codegen_flags: <defaults>
</compile_context>

<pallas_src>
import functools
import math

import jax
import jax.numpy as jnp
from jax.experimental import pallas as pl
from jax.experimental.pallas import tpu as pltpu

ALPHA = 2.1
OMEGA = 14.0
EPSILON = 1.0
THETA = 0.5

# Constants folded at trace time.
LOG_R = math.log(THETA / EPSILON)     # log(theta/eps)
R_INV = EPSILON / THETA               # (theta/eps) ** -1
INV_EPS = 1.0 / EPSILON

LANES = 128
MAX_ROW_TILE = 1024   # (1024,128) f32 block = 512 KiB; 2 inputs x 2 bufs + scratch ~ 2.5 MiB VMEM
NUM_SPLITS = 2        # leading "parallel" grid axis (both TCs on v7x; no-op on v5e/v6e)


def _awing_kernel(yp_ref, y_ref, out_ref, acc_ref, *, n_total, row_tile,
                  tiles_per_split):
    c = pl.program_id(0)          # parallel split
    i = pl.program_id(1)          # reduction step within the split

    @pl.when(i == 0)
    def _():
        acc_ref[...] = jnp.zeros_like(acc_ref)

    yp = yp_ref[...].astype(jnp.float32)
    y = y_ref[...].astype(jnp.float32)

    # Validity mask based on the *logical* tile index: zeroes the ragged tail
    # of the last tile and the clamped/duplicate tile when the tile count does
    # not divide evenly between the splits.
    t_logical = c * tiles_per_split + i
    row = jax.lax.broadcasted_iota(jnp.int32, (row_tile, LANES), 0)
    lane = jax.lax.broadcasted_iota(jnp.int32, (row_tile, LANES), 1)
    flat_idx = (t_logical * row_tile + row) * LANES + lane
    valid = flat_idx < n_total

    p = ALPHA - y                              # alpha - y
    rp = jnp.exp(p * LOG_R)                    # (theta/eps) ** (alpha - y)      (1 exp)
    rpm1 = rp * R_INV                          # (theta/eps) ** (alpha - y - 1)  (1 mul)
    a = (OMEGA / EPSILON) * p * rpm1 / (1.0 + rp)
    cst = THETA * a - OMEGA * jnp.log(1.0 + rp)

    d = jnp.abs(y - yp)
    case1 = OMEGA * jnp.log(1.0 + jnp.power(d * INV_EPS, p))
    case2 = a * d - cst
    loss = jnp.where(d < THETA, case1, case2)

    acc_ref[...] += jnp.where(valid, loss, 0.0)

    @pl.when(i == pl.num_programs(1) - 1)
    def _():
        total = jnp.sum(acc_ref[...])
        out_ref[...] = jnp.broadcast_to(total, out_ref.shape)


def _prep(a):
    a = jnp.ravel(a)
    if a.dtype not in (jnp.float32, jnp.bfloat16):
        a = a.astype(jnp.float32)   # keep bf16/f32 as-is (halves HBM traffic for bf16)
    return a


@jax.jit
def awing_loss(y_pred, y):
    assert y_pred.shape == y.shape
    yp = _prep(y_pred)
    yt = _prep(y)
    n = yp.shape[0]
    if n == 0:
        return jnp.float32(0.0)

    # Lane-align.  Common case (n % 128 == 0): pure reshape, no extra HBM pass.
    pad = (-n) % LANES
    if pad:
        yp = jnp.pad(yp, (0, pad))
        yt = jnp.pad(yt, (0, pad))
    rows = (n + pad) // LANES
    yp2 = yp.reshape(rows, LANES)
    yt2 = yt.reshape(rows, LANES)

    # Biggest tile that fits comfortably in VMEM; full-extent block for small
    # inputs (always a legal block shape).
    row_tile = rows if rows <= MAX_ROW_TILE else MAX_ROW_TILE
    num_tiles = pl.cdiv(rows, row_tile)
    tiles_per_split = pl.cdiv(num_tiles, NUM_SPLITS)

    def in_map(c, i):
        t = c * tiles_per_split + i
        return (jnp.minimum(t, num_tiles - 1), 0)   # clamp; duplicates are masked in-kernel

    kernel = functools.partial(
        _awing_kernel,
        n_total=n,
        row_tile=row_tile,
        tiles_per_split=tiles_per_split,
    )

    partials = pl.pallas_call(
        kernel,
        out_shape=jax.ShapeDtypeStruct((NUM_SPLITS, 8, LANES), jnp.float32),
        grid_spec=pltpu.PrefetchScalarGridSpec(
            num_scalar_prefetch=0,
            grid=(NUM_SPLITS, tiles_per_split),
            in_specs=[
                pl.BlockSpec((row_tile, LANES), in_map),
                pl.BlockSpec((row_tile, LANES), in_map),
            ],
            out_specs=pl.BlockSpec((1, 8, LANES), lambda c, i: (c, 0, 0)),
            scratch_shapes=[pltpu.VMEM((row_tile, LANES), jnp.float32)],
        ),
        compiler_params=pltpu.CompilerParams(
            dimension_semantics=("parallel", "arbitrary"),
        ),
    )(yp2, yt2)

    return jnp.sum(partials[:, 0, 0])


def awing_loss_ref(y_pred, y):
    """Pure-JAX reference (mirrors the PyTorch forward exactly)."""
    y_pred = y_pred.astype(jnp.float32)
    y = y.astype(jnp.float32)
    r = THETA / EPSILON
    p = ALPHA - y
    rp = jnp.power(r, p)
    A = OMEGA * (1.0 / (1.0 + rp)) * p * jnp.power(r, p - 1.0) / EPSILON
    C = THETA * A - OMEGA * jnp.log(1.0 + rp)
    d = jnp.abs(y - y_pred)
    case1 = OMEGA * jnp.log(1.0 + jnp.power(d / EPSILON, p))
    case2 = A * d - C
    return jnp.sum(jnp.where(d < THETA, case1, case2))


if __name__ == "__main__":
    def check(shape, key):
        k1, k2 = jax.random.split(key)
        y_pred = jax.random.uniform(k1, shape, dtype=jnp.float32)
        y = jax.random.uniform(k2, shape, dtype=jnp.float32)
        out = awing_loss(y_pred, y)
        jax.block_until_ready(out)
        ref = awing_loss_ref(y_pred, y)
        assert jnp.allclose(out, ref, rtol=1e-4, atol=1e-3), (shape, out, ref)

    k1, k2, k3 = jax.random.split(jax.random.PRNGKey(0), 3)
    check((2, 4, 16, 16), k1)     # small NCHW heatmap (single tile; 2nd split fully masked)
    check((2, 3, 17, 19), k2)     # ragged size -> lane pad + in-kernel mask
    check((4, 16, 64, 64), k3)    # multi-tile -> both splits do real work

    print("KERNEL_OK")
</pallas_src>

<mosaic_0001>
module attributes {stable_mosaic.version = 11 : i64} {
  func.func @_awing_kernel(%arg0: i32, %arg1: i32, %arg2: memref<16x128xf32, #tpu.memory_space<vmem>>, %arg3: memref<16x128xf32, #tpu.memory_space<vmem>>, %arg4: memref<1x8x128xf32, #tpu.memory_space<vmem>>, %arg5: memref<16x128xf32, #tpu.memory_space<vmem>>) attributes {dimension_semantics = [#tpu.dimension_semantics<parallel>, #tpu.dimension_semantics<arbitrary>], iteration_bounds = array<i64: 2, 1>, scalar_prefetch = 0 : i64, scratch_operands = 1 : i64, tpu.core_type = #tpu.core_type<tc>, window_params = [{transform_indices = @transform_0, window_bounds = array<i64: 16, 128>}, {transform_indices = @transform_1, window_bounds = array<i64: 16, 128>}, {transform_indices = @transform_2, window_bounds = array<i64: 1, 8, 128>}]} {
    %c0_i32 = arith.constant 0 : i32
    %0 = arith.cmpi eq, %arg1, %c0_i32 : i32
    %1 = arith.extui %0 : i1 to i32
    %c0_i32_0 = arith.constant 0 : i32
    %2 = arith.cmpi ne, %1, %c0_i32_0 : i32
    scf.if %2 {
      %cst_22 = arith.constant 0.000000e+00 : f32
      %61 = vector.broadcast %cst_22 : f32 to vector<16x128xf32>
      %c0_23 = arith.constant 0 : index
      %c0_24 = arith.constant 0 : index
      %62 = vector.load %arg5[%c0_23, %c0_24] : memref<16x128xf32, #tpu.memory_space<vmem>>, vector<16x128xf32>
      tpu.vector_store %arg5[%c0_23, %c0_24], %61 {strides = array<i32>} : memref<16x128xf32, #tpu.memory_space<vmem>>, vector<16x128xf32>,
    } else {
    }
    %c0 = arith.constant 0 : index
    %c0_1 = arith.constant 0 : index
    %3 = vector.load %arg2[%c0, %c0_1] : memref<16x128xf32, #tpu.memory_space<vmem>>, vector<16x128xf32>
    %c0_2 = arith.constant 0 : index
    %c0_3 = arith.constant 0 : index
    %4 = vector.load %arg3[%c0_2, %c0_3] : memref<16x128xf32, #tpu.memory_space<vmem>>, vector<16x128xf32>
    %c1_i32 = arith.constant 1 : i32
    %5 = arith.muli %arg0, %c1_i32 : i32
    %6 = arith.addi %5, %arg1 : i32
    %7 = tpu.iota {dimensions = array<i32: 0>} : vector<16x128xi32>
    %8 = tpu.iota {dimensions = array<i32: 1>} : vector<16x128xi32>
    %c16_i32 = arith.constant 16 : i32
    %9 = arith.muli %6, %c16_i32 : i32
    %10 = vector.broadcast %9 : i32 to vector<16x128xi32>
    %11 = arith.addi %10, %7 : vector<16x128xi32>
    %c128_i32 = arith.constant 128 : i32
    %12 = vector.broadcast %c128_i32 : i32 to vector<16x128xi32>
    %13 = arith.muli %11, %12 : vector<16x128xi32>
    %14 = arith.addi %13, %8 : vector<16x128xi32>
    %c2048_i32 = arith.constant 2048 : i32
    %15 = vector.broadcast %c2048_i32 : i32 to vector<16x128xi32>
    %16 = arith.cmpi slt, %14, %15 : vector<16x128xi32>
    %cst = arith.constant 2.100000e+00 : f32
    %17 = vector.broadcast %cst : f32 to vector<16x128xf32>
    %18 = arith.subf %17, %4 : vector<16x128xf32>
    %cst_4 = arith.constant -0.693147182 : f32
    %19 = vector.broadcast %cst_4 : f32 to vector<16x128xf32>
    %20 = arith.mulf %18, %19 : vector<16x128xf32>
    %21 = math.exp %20 : vector<16x128xf32>
    %cst_5 = arith.constant 2.000000e+00 : f32
    %22 = vector.broadcast %cst_5 : f32 to vector<16x128xf32>
    %23 = arith.mulf %21, %22 : vector<16x128xf32>
    %cst_6 = arith.constant 1.400000e+01 : f32
    %24 = vector.broadcast %cst_6 : f32 to vector<16x128xf32>
    %25 = arith.mulf %24, %18 : vector<16x128xf32>
    %26 = arith.mulf %25, %23 : vector<16x128xf32>
    %cst_7 = arith.constant 1.000000e+00 : f32
    %27 = vector.broadcast %cst_7 : f32 to vector<16x128xf32>
    %28 = arith.addf %27, %21 : vector<16x128xf32>
    %29 = arith.divf %26, %28 : vector<16x128xf32>
    %cst_8 = arith.constant 5.000000e-01 : f32
    %30 = vector.broadcast %cst_8 : f32 to vector<16x128xf32>
    %31 = arith.mulf %30, %29 : vector<16x128xf32>
    %cst_9 = arith.constant 1.000000e+00 : f32
    %32 = vector.broadcast %cst_9 : f32 to vector<16x128xf32>
    %33 = arith.addf %32, %21 : vector<16x128xf32>
    %34 = math.log %33 : vector<16x128xf32>
    %cst_10 = arith.constant 1.400000e+01 : f32
    %35 = vector.broadcast %cst_10 : f32 to vector<16x128xf32>
    %36 = arith.mulf %35, %34 : vector<16x128xf32>
    %37 = arith.subf %31, %36 : vector<16x128xf32>
    %38 = arith.subf %4, %3 : vector<16x128xf32>
    %39 = math.absf %38 : vector<16x128xf32>
    %cst_11 = arith.constant 1.000000e+00 : f32
    %40 = vector.broadcast %cst_11 : f32 to vector<16x128xf32>
    %41 = arith.mulf %39, %40 : vector<16x128xf32>
    %42 = math.powf %41, %18 : vector<16x128xf32>
    %cst_12 = arith.constant 1.000000e+00 : f32
    %43 = vector.broadcast %cst_12 : f32 to vector<16x128xf32>
    %44 = arith.addf %43, %42 : vector<16x128xf32>
    %45 = math.log %44 : vector<16x128xf32>
    %cst_13 = arith.constant 1.400000e+01 : f32
    %46 = vector.broadcast %cst_13 : f32 to vector<16x128xf32>
    %47 = arith.mulf %46, %45 : vector<16x128xf32>
    %48 = arith.mulf %29, %39 : vector<16x128xf32>
    %49 = arith.subf %48, %37 : vector<16x128xf32>
    %cst_14 = arith.constant 5.000000e-01 : f32
    %50 = vector.broadcast %cst_14 : f32 to vector<16x128xf32>
    %51 = arith.cmpf olt, %39, %50 : vector<16x128xf32>
    %52 = arith.select %51, %47, %49 : vector<16x128xi1>, vector<16x128xf32>
    %c0_15 = arith.constant 0 : index
    %c0_16 = arith.constant 0 : index
    %53 = vector.load %arg5[%c0_15, %c0_16] : memref<16x128xf32, #tpu.memory_space<vmem>>, vector<16x128xf32>
    %cst_17 = arith.constant 0.000000e+00 : f32
    %54 = vector.broadcast %cst_17 : f32 to vector<16x128xf32>
    %55 = arith.select %16, %52, %54 : vector<16x128xi1>, vector<16x128xf32>
    %56 = arith.addf %53, %55 : vector<16x128xf32>
    %c0_18 = arith.constant 0 : index
    %c0_19 = arith.constant 0 : index
    %57 = vector.load %arg5[%c0_18, %c0_19] : memref<16x128xf32, #tpu.memory_space<vmem>>, vector<16x128xf32>
    tpu.vector_store %arg5[%c0_18, %c0_19], %56 {strides = array<i32>} : memref<16x128xf32, #tpu.memory_space<vmem>>, vector<16x128xf32>,
    %c0_i32_20 = arith.constant 0 : i32
    %58 = arith.cmpi eq, %arg1, %c0_i32_20 : i32
    %59 = arith.extui %58 : i1 to i32
    %c0_i32_21 = arith.constant 0 : i32
    %60 = arith.cmpi ne, %59, %c0_i32_21 : i32
    scf.if %60 {
      %c0_22 = arith.constant 0 : index
      %c0_23 = arith.constant 0 : index
      %61 = vector.load %arg5[%c0_22, %c0_23] : memref<16x128xf32, #tpu.memory_space<vmem>>, vector<16x128xf32>
      %62 = vector.shape_cast %61 : vector<16x128xf32> to vector<1x16x128xf32>
      %cst_24 = arith.constant dense<0.000000e+00> : vector<1xf32>
      %63 = vector.multi_reduction <add>, %62, %cst_24 [1, 2] : vector<1x16x128xf32> to vector<1xf32>
      %64 = vector.shape_cast %63 : vector<1xf32> to vector<1x1x1xf32>
      %65 = vector.extract %64[0, 0, 0] : f32 from vector<1x1x1xf32>
      %66 = vector.broadcast %65 : f32 to vector<1x8x128xf32>
      %c0_25 = arith.constant 0 : index
      %c0_26 = arith.constant 0 : index
      %c0_27 = arith.constant 0 : index
      %67 = vector.load %arg4[%c0_25, %c0_26, %c0_27] : memref<1x8x128xf32, #tpu.memory_space<vmem>>, vector<1x8x128xf32>
      tpu.vector_store %arg4[%c0_25, %c0_26, %c0_27], %66 {strides = array<i32>} : memref<1x8x128xf32, #tpu.memory_space<vmem>>, vector<1x8x128xf32>,
    } else {
    }
    return
  }
  func.func @transform_0(%arg0: i32, %arg1: i32) -> (i32, i32) {
    %c1_i32 = arith.constant 1 : i32
    %0 = arith.muli %arg0, %c1_i32 : i32
    %1 = arith.addi %0, %arg1 : i32
    %c0_i32 = arith.constant 0 : i32
    %2 = arith.minsi %1, %c0_i32 : i32
    %c0_i32_0 = arith.constant 0 : i32
    %c0_i32_1 = arith.constant 0 : i32
    return %2, %c0_i32_0 : i32, i32
  }
  func.func @transform_1(%arg0: i32, %arg1: i32) -> (i32, i32) {
    %c1_i32 = arith.constant 1 : i32
    %0 = arith.muli %arg0, %c1_i32 : i32
    %1 = arith.addi %0, %arg1 : i32
    %c0_i32 = arith.constant 0 : i32
    %2 = arith.minsi %1, %c0_i32 : i32
    %c0_i32_0 = arith.constant 0 : i32
    %c0_i32_1 = arith.constant 0 : i32
    return %2, %c0_i32_0 : i32, i32
  }
  func.func @transform_2(%arg0: i32, %arg1: i32) -> (i32, i32, i32) {
    %c0_i32 = arith.constant 0 : i32
    %c0_i32_0 = arith.constant 0 : i32
    %c0_i32_1 = arith.constant 0 : i32
    return %arg0, %c0_i32, %c0_i32_0 : i32, i32, i32
  }
}

</mosaic_0001>

<llo_original>
// kernel: awing_loss.1
$region0: #{awing_loss.1}
  #allocation0 [shape = 'u32[]', space=smem, size = 0x4, offset = 0x4, fixed_abs, tag = 'smem constant byte address 0x4 - core index']
  #allocation1 [shape = 'u32[144,128]{1,0:T(1,128)}', space=vmem, size = 0x12000, scoped, tag = 'internal scratch']
  #allocation2 [shape = 'f32[16,128]{1,0:T(8,128)}', space=vmem, size = 0x2000, scoped, tag = 'scratch operand']
  %s0 = inlined_call_operand.vmem [shape: f32[16,128], index: 0, kind: input, shape index: {}]
  %s1 = inlined_call_operand.vmem [shape: f32[16,128], index: 1, kind: input, shape index: {}]
  %s2 = inlined_call_operand.vmem [shape: f32[2,8,128], index: 2, kind: output, shape index: {}]
  %s3 = sld [smem:[#allocation0]]
  $region49: #{awing_loss.1} parent=0
    _
  %s5 = ssub.s32 1, %s3
  %s6 = scalar_select 0, %s5, %s3
  loop: start=0, step=1, limit=4
  $region2: #{awing_loss.1} parent=0 // loop_pre_header
    _
  $region3: #{awing_loss.1} parent=0 // loop_header
    %s8 = sphi 0, %s12
    %p9 = scmp.ge.s32.totalorder %s8, 4
    %s15 = sphi 0, %s27
    %s16 = sphi 0, %s23
    %s17 = sphi 0, %s15
    %s18 = sphi 0, %s16
    %s19 = sphi 0, %s17
    %s20 = sphi 0, %s18
    %s36 = sphi 0, %s38
    %s39 = sphi 0, %s36
    %s40 = sphi 0, %s39
    %s56 = sphi 0, %s40
    %s68 = sphi 0, %s70
    %s71 = sphi 0, %s68
    %s72 = sphi 0, %s71
    %s88 = sphi 0, %s72
    %s94 = sphi 0, %s96
    %s97 = sphi 0, %s94
    %s98 = sphi 0, %s97
    %s114 = sphi 0, %s98
  $region4: #{awing_loss.1} parent=0 // loop_header_branch
    %11 = sbr.rel (%p9) target = $region8
  $region5: #{awing_loss.1} parent=0 // loop_body
    %s13 = ssub.s32 %s8, 1
    %s14 = ssub.s32 %s8, 2
    %s21 = sadd.s32 1, %s16
    %p22 = scmp.ge.s32.totalorder %s21, 1
    %s23 = scalar_select %p22, 0, %s21
    %s24 = sadd.s32 1, %s15
    %s25 = scalar_select %p22, %s24, %s15
    %p26 = scmp.ge.s32.totalorder %s25, 2
    %s27 = scalar_select %p26, 0, %s25
    %s28 = sadd.s32 %s15, %s16
    %p29 = scmp.lt.s32.totalorder %s28, 0
    %s30 = scalar_select %p29, %s28, 0
    %s31 = sadd.s32 %s27, %s23
    %p32 = scmp.lt.s32.totalorder %s31, 0
    %s33 = scalar_select %p32, %s31, 0
    %s34 = ssub.s32 %s30, %s33
    %p35 = scmp.eq.s32.totalorder %s34, 0
    %s37 = sadd.s32 %s36, 1
    %s38 = scalar_select %p35, %s36, %s37
    %p41 = pneg %p35
    %p42 = scmp.eq.s32.totalorder %s8, 1
    %p43 = por %p41, %p42
    %p44 = scmp.ne.s32.totalorder %s36, %s39
    %p45 = scmp.eq.s32.totalorder %s8, 0
    %p46 = por %p44, %p45
    %p47 = scmp.ne.s32.totalorder %s36, %s39
    %p48 = scmp.eq.s32.totalorder %s13, 1
    %p49 = por %p47, %p48
    %p50 = scmp.ne.s32.totalorder %s39, %s40
    %p51 = scmp.eq.s32.totalorder %s13, 0
    %p52 = por %p50, %p51
    %p53 = scmp.ne.s32.totalorder %s39, %s40
    %p54 = scmp.eq.s32.totalorder %s14, 1
    %p55 = por %p53, %p54
    %p57 = scmp.ne.s32.totalorder %s40, %s56
    %p58 = scmp.eq.s32.totalorder %s14, 0
    %p59 = por %p57, %p58
    %s60 = sadd.s32 %s15, %s16
    %p61 = scmp.lt.s32.totalorder %s60, 0
    %s62 = scalar_select %p61, %s60, 0
    %s63 = sadd.s32 %s27, %s23
    %p64 = scmp.lt.s32.totalorder %s63, 0
    %s65 = scalar_select %p64, %s63, 0
    %s66 = ssub.s32 %s62, %s65
    %p67 = scmp.eq.s32.totalorder %s66, 0
    %s69 = sadd.s32 %s68, 1
    %s70 = scalar_select %p67, %s68, %s69
    %p73 = pneg %p67
    %p74 = scmp.eq.s32.totalorder %s8, 1
    %p75 = por %p73, %p74
    %p76 = scmp.ne.s32.totalorder %s68, %s71
    %p77 = scmp.eq.s32.totalorder %s8, 0
    %p78 = por %p76, %p77
    %p79 = scmp.ne.s32.totalorder %s68, %s71
    %p80 = scmp.eq.s32.totalorder %s13, 1
    %p81 = por %p79, %p80
    %p82 = scmp.ne.s32.totalorder %s71, %s72
    %p83 = scmp.eq.s32.totalorder %s13, 0
    %p84 = por %p82, %p83
    %p85 = scmp.ne.s32.totalorder %s71, %s72
    %p86 = scmp.eq.s32.totalorder %s14, 1
    %p87 = por %p85, %p86
    %p89 = scmp.ne.s32.totalorder %s72, %s88
    %p90 = scmp.eq.s32.totalorder %s14, 0
    %p91 = por %p89, %p90
    %s92 = ssub.s32 %s15, %s27
    %p93 = scmp.eq.s32.totalorder %s92, 0
    %s95 = sadd.s32 %s94, 1
    %s96 = scalar_select %p93, %s94, %s95
    %p99 = pneg %p93
    %p100 = scmp.eq.s32.totalorder %s8, 1
    %p101 = por %p99, %p100
    %p102 = scmp.ne.s32.totalorder %s94, %s97
    %p103 = scmp.eq.s32.totalorder %s8, 0
    %p104 = por %p102, %p103
    %p105 = scmp.ne.s32.totalorder %s94, %s97
    %p106 = scmp.eq.s32.totalorder %s13, 1
    %p107 = por %p105, %p106
    %p108 = scmp.ne.s32.totalorder %s97, %s98
    %p109 = scmp.eq.s32.totalorder %s13, 0
    %p110 = por %p108, %p109
    %p111 = scmp.ne.s32.totalorder %s97, %s98
    %p112 = scmp.eq.s32.totalorder %s14, 1
    %p113 = por %p111, %p112
    %p115 = scmp.ne.s32.totalorder %s98, %s114
    %p116 = scmp.eq.s32.totalorder %s14, 0
    %p117 = por %p115, %p116
    %p118 = scmp.le.s32.totalorder 1, %s8
    %p119 = scmp.lt.s32.totalorder %s8, 3
    %p120 = pnand %p118, %p119
    %p121 = pneg %p120
    // Predicated region
    $region9: #{awing_loss.1} parent=5 // pred_check
      _
    $region10: #{awing_loss.1} parent=5 // pred_check_branch
      %123 = sbr.rel (%p120) target = $region12
    $region11: #{awing_loss.1} parent=5 // pred_region
      %s124 = ssub.s32 %s8, 1
    $region12: #{awing_loss.1} parent=5 // pred_fallthru
      _
    %p125 = scmp.lt.s32.totalorder %s8, 2
    // Predicated region
    $region13: #{awing_loss.1} parent=5 // pred_check
      %p126 = pneg %p125
    $region14: #{awing_loss.1} parent=5 // pred_check_branch
      %128 = sbr.rel (%p126) target = $region16
    $region15: #{awing_loss.1} parent=5 // pred_region
      // Predicated region
      $region17: #{awing_loss.1} parent=15 // pred_check
        %p129 = pneg %p46
      $region18: #{awing_loss.1} parent=15 // pred_check_branch
        %131 = sbr.rel (%p129) target = $region20
      $region19: #{awing_loss.1} parent=15 // pred_region
        %s132 = sadd.s32 %s15, %s16
        %p133 = scmp.lt.s32.totalorder %s132, 0
        %s134 = scalar_select %p133, %s132, 0
        %s135 = smul.u32 2, %s134
        %p136 = scmp.lt.s32.totalorder %s135, 1
        %s137 = scalar_select %p136, %s135, 1
        %s138 = smul.addr %s137, 8
        %s139 = scalar_lea.vmem %s0, %s138
        %s140 = sadd.s32 %s15, %s16
        %p141 = scmp.lt.s32.totalorder %s140, 0
        %s142 = scalar_select %p141, %s140, 0
        %s143 = smul.u32 2, %s142
      $region20: #{awing_loss.1} parent=15 // pred_fallthru
        _
      // Predicated region
      $region21: #{awing_loss.1} parent=15 // pred_check
        %p144 = pneg %p78
      $region22: #{awing_loss.1} parent=15 // pred_check_branch
        %146 = sbr.rel (%p144) target = $region24
      $region23: #{awing_loss.1} parent=15 // pred_region
        %s147 = sadd.s32 %s15, %s16
        %p148 = scmp.lt.s32.totalorder %s147, 0
        %s149 = scalar_select %p148, %s147, 0
        %s150 = smul.u32 2, %s149
        %p151 = scmp.lt.s32.totalorder %s150, 1
        %s152 = scalar_select %p151, %s150, 1
        %s153 = smul.addr %s152, 8
        %s154 = scalar_lea.vmem %s1, %s153
        %s155 = sadd.s32 %s15, %s16
        %p156 = scmp.lt.s32.totalorder %s155, 0
        %s157 = scalar_select %p156, %s155, 0
        %s158 = smul.u32 2, %s157
      $region24: #{awing_loss.1} parent=15 // pred_fallthru
        _
    $region16: #{awing_loss.1} parent=5 // pred_fallthru
      _
    %p159 = scmp.le.s32.totalorder 1, %s8
    %p160 = scmp.lt.s32.totalorder %s8, 3
    %p161 = pnand %p159, %p160
    %p162 = pneg %p161
    // Predicated region
    $region25: #{awing_loss.1} parent=5 // pred_check
      _
    $region26: #{awing_loss.1} parent=5 // pred_check_branch
      %164 = sbr.rel (%p161) target = $region28
    $region27: #{awing_loss.1} parent=5 // pred_region
      %s165 = ssub.s32 %s8, 1
      %s166 = sadd.s32 %s17, %s18
      %p167 = scmp.lt.s32.totalorder %s166, 0
      %s168 = scalar_select %p167, %s166, 0
      %s169 = smul.u32 2, %s168
      %p170 = scmp.lt.s32.totalorder %s169, 1
      %s171 = scalar_select %p170, %s169, 1
      %s172 = smul.addr %s171, 8
      %s173 = scalar_lea.vmem %s0, %s172
      %p174 = pneg %p52
      %p175 = pneg %p49
      %s176 = sadd.s32 %s17, %s18
      %p177 = scmp.lt.s32.totalorder %s176, 0
      %s178 = scalar_select %p177, %s176, 0
      %s179 = smul.u32 2, %s178
      %p180 = scmp.lt.s32.totalorder %s179, 1
      %s181 = scalar_select %p180, %s179, 1
      %s182 = smul.addr %s181, 8
      %s183 = scalar_lea.vmem %s1, %s182
      %p184 = pneg %p84
      %p185 = pneg %p81
      %p186 = pneg %p110
      %p187 = pneg %p107
      %p188 = scmp.lt.s32.totalorder %s17, 1
      %s189 = scalar_select %p188, %s17, 1
      %s190 = smul.addr %s189, 8
      %s191 = scalar_lea.vmem %s2, %s190
      %s192 = sadd.s32 %s17, %s18
      %p193 = scmp.lt.s32.totalorder %s192, 0
      %s194 = scalar_select %p193, %s192, 0
      %s195 = smul.u32 2, %s194
      %p196 = scmp.lt.s32.totalorder %s195, 1
      %s197 = scalar_select %p196, %s195, 1
      %s198 = smul.addr %s197, 8
      %s199 = scalar_lea.vmem %s0, %s198
      %s200 = sadd.s32 %s17, %s18
      %p201 = scmp.lt.s32.totalorder %s200, 0
      %s202 = scalar_select %p201, %s200, 0
      %s203 = smul.u32 2, %s202
      %s204 = sadd.s32 %s17, %s18
      %p205 = scmp.lt.s32.totalorder %s204, 0
      %s206 = scalar_select %p205, %s204, 0
      %s207 = smul.u32 2, %s206
      %p208 = scmp.lt.s32.totalorder %s207, 1
      %s209 = scalar_select %p208, %s207, 1
      %s210 = smul.addr %s209, 8
      %s211 = scalar_lea.vmem %s1, %s210
      %s212 = sadd.s32 %s17, %s18
      %p213 = scmp.lt.s32.totalorder %s212, 0
      %s214 = scalar_select %p213, %s212, 0
      %s215 = smul.u32 2, %s214
      %p216 = scmp.lt.s32.totalorder %s17, 1
      %s217 = scalar_select %p216, %s17, 1
      %s218 = smul.addr %s217, 8
      %s219 = scalar_lea.vmem %s2, %s218
      %p220 = scmp.eq.s32.totalorder %s18, 0
      // Predicated region
      $region29: #{awing_loss.1} parent=27 // pred_check
        %p221 = pneg %p220
      $region30: #{awing_loss.1} parent=27 // pred_check_branch
        %223 = sbr.rel (%p221) target = $region32
      $region31: #{awing_loss.1} parent=27 // pred_region
        %224 = vst [vmem:[#allocation2] sm:$0xff] 0.0
        %225 = vst [vmem:[#allocation2 + $0x8] sm:$0xff] 0.0
      $region32: #{awing_loss.1} parent=27 // pred_fallthru
        _
      %v226 = vld [vmem:[%s199] sm:$0xff]
      %v227 = vld [vmem:[%s199 + $0x8] sm:$0xff]
      %v228 = vld [vmem:[%s211] sm:$0xff]
      %v229 = vld [vmem:[%s211 + $0x8] sm:$0xff]
      %s230 = sadd.s32 %s17, %s18
      %v231 = vlaneseq
      %v232 = vshrl.u32 %v231, 7
      %v233 = vadd.s32 %v232, 8
      %v234 = vlaneseq
      %v235 = vand.u32 %v234, 127
      %s236 = smul.u32 %s230, 16
      %v237 = vstv %s236
      %v238 = vadd.s32 %v237, %v232
      %v239 = vadd.s32 %v237, %v233
      %v240 = vmul.u32 %v238, 128
      %v241 = vmul.u32 %v239, 128
      %v242 = vadd.s32 %v240, %v235
      %v243 = vadd.s32 %v241, %v235
      %vm244 = vcmp.lt.s32.totalorder %v242, 2048
      %vm245 = vcmp.lt.s32.totalorder %v243, 2048
      %v246 = vsub.f32 2.1, %v228
      %v247 = vsub.f32 2.1, %v229
      %v248 = vmul.f32 %v246, -0.6931472
      %v249 = vmul.f32 %v247, -0.6931472
      %v250 = vmul.f32 %v248, 1.442695
      %v251 = vpow.pop %v250
      %v252 = vmul.f32 %v249, 1.442695
      %v253 = vpow.pop %v252
      %v254 = vmul.f32 %v251, 2.0
      %v255 = vmul.f32 %v253, 2.0
      %v256 = vmul.f32 %v246, 14.0
      %v257 = vmul.f32 %v247, 14.0
      %v258 = vmul.f32 %v256, %v254
      %v259 = vmul.f32 %v257, %v255
      %v260 = vadd.f32 %v251, 1.0
      %v261 = vadd.f32 %v253, 1.0
      %v262 = vrcp.pop %v260
      %v263 = vmul.f32 %v258, %v262
      %v264 = vrcp.pop %v261
      %v265 = vmul.f32 %v259, %v264
      %v266 = vmul.f32 %v263, 0.5
      %v267 = vmul.f32 %v265, 0.5
      %v268 = vlog2.pop %v260
      %v269 = vmul.f32 %v268, 0.6931472
      %v270 = vlog2.pop %v261
      %v271 = vmul.f32 %v270, 0.6931472
      %v272 = vmul.f32 %v269, 14.0
      %v273 = vmul.f32 %v271, 14.0
      %v274 = vsub.f32 %v266, %v272
      %v275 = vsub.f32 %v267, %v273
      %v276 = vsub.f32 %v228, %v226
      %v277 = vsub.f32 %v229, %v227
      %v278 = vand.u32 2147483647, %v276
      %v279 = vand.u32 2147483647, %v277
      %v280 = vpow.f32 %v278, %v246
      %v281 = vpow.f32 %v279, %v247
      %v282 = vadd.f32 %v280, 1.0
      %v283 = vadd.f32 %v281, 1.0
      %v284 = vlog2.pop %v282
      %v285 = vmul.f32 %v284, 0.6931472
      %v286 = vlog2.pop %v283
      %v287 = vmul.f32 %v286, 0.6931472
      %v288 = vmul.f32 %v285, 14.0
      %v289 = vmul.f32 %v287, 14.0
      %v290 = vmul.f32 %v263, %v278
      %v291 = vmul.f32 %v265, %v279
      %v292 = vsub.f32 %v290, %v274
      %v293 = vsub.f32 %v291, %v275
      %vm294 = vcmp.lt.f32.partialorder %v278, 0.5
      %vm295 = vcmp.lt.f32.partialorder %v279, 0.5
      %v296 = vsel %vm294, %v288, %v292
      %v297 = vsel %vm295, %v289, %v293
      %v298 = vld [vmem:[#allocation2] sm:$0xff]
      %v299 = vld [vmem:[#allocation2 + $0x8] sm:$0xff]
      %v300 = vsel %vm244, %v296, 0.0
      %v301 = vsel %vm245, %v297, 0.0
      %v302 = vadd.f32 %v298, %v300
      %v303 = vadd.f32 %v299, %v301
      %304 = vst [vmem:[#allocation2] sm:$0xff] %v302
      %305 = vst [vmem:[#allocation2 + $0x8] sm:$0xff] %v303
      // Predicated region
      $region33: #{awing_loss.1} parent=27 // pred_check
        %p306 = pneg %p220
      $region34: #{awing_loss.1} parent=27 // pred_check_branch
        %308 = sbr.rel (%p306) target = $region36
      $region35: #{awing_loss.1} parent=27 // pred_region
        %v309 = vld [vmem:[#allocation2] sm:$0xff]
        %v310 = vld [vmem:[#allocation2 + $0x8] sm:$0xff]
        %v311 = vadd.f32 %v309, %v310
        %312 = vadd.xlane.f32.xlu0 %v311
        %v313 = vpop.xlane.xlu0 %312
        %v314 = vrot.slane %v313, 4
        %v315 = vadd.f32 %v313, %v314
        %v316 = vrot.slane %v315, 2
        %v317 = vadd.f32 %v315, %v316
        %v318 = vrot.slane %v317, 1
        %v319 = vadd.f32 %v317, %v318
        %s320 = vtos %v319
        %v321 = vstv %s320
        %322 = vst [vmem:[%s219] sm:$0xff] %v321
      $region36: #{awing_loss.1} parent=27 // pred_fallthru
        _
      %p323 = scmp.lt.s32.totalorder %s17, 1
      %s324 = scalar_select %p323, %s17, 1
      %s325 = smul.addr %s324, 8
      %s326 = scalar_lea.vmem %s2, %s325
      // Predicated region
      $region37: #{awing_loss.1} parent=27 // pred_check
        %p327 = pneg %p107
      $region38: #{awing_loss.1} parent=27 // pred_check_branch
        %329 = sbr.rel (%p327) target = $region40
      $region39: #{awing_loss.1} parent=27 // pred_region
        _
      $region40: #{awing_loss.1} parent=27 // pred_fallthru
        _
    $region28: #{awing_loss.1} parent=5 // pred_fallthru
      _
    %p330 = scmp.le.s32.totalorder 2, %s8
    // Predicated region
    $region41: #{awing_loss.1} parent=5 // pred_check
      %p331 = pneg %p330
    $region42: #{awing_loss.1} parent=5 // pred_check_branch
      %333 = sbr.rel (%p331) target = $region44
    $region43: #{awing_loss.1} parent=5 // pred_region
      %s334 = ssub.s32 %s8, 2
      // Predicated region
      $region45: #{awing_loss.1} parent=43 // pred_check
        %p335 = pneg %p113
      $region46: #{awing_loss.1} parent=43 // pred_check_branch
        %337 = sbr.rel (%p335) target = $region48
      $region47: #{awing_loss.1} parent=43 // pred_region
        %p338 = scmp.lt.s32.totalorder %s19, 1
        %s339 = scalar_select %p338, %s19, 1
        %s340 = smul.addr %s339, 8
        %s341 = scalar_lea.vmem %s2, %s340
      $region48: #{awing_loss.1} parent=43 // pred_fallthru
        _
    $region44: #{awing_loss.1} parent=5 // pred_fallthru
      _
  $region6: #{awing_loss.1} parent=0 // loop_footer
    %s12 = sadd.s32 1, %s8
  $region7: #{awing_loss.1} parent=0 // loop_footer_branch
    %7 = sbr.rel target = $region3
  $region8: #{awing_loss.1} parent=0 // loop_exit
    _

</llo_original>
